<compile_context>
chip_gen: v7x
topology: tpu7x:2x2x1
jax: 0.10.0
libtpu: 0.0.40
codegen_flags: <defaults>
</compile_context>

<pallas_src>
import jax
import jax.numpy as jnp
from jax.experimental import pallas as pl
from jax.experimental.pallas import tpu as pltpu

_LANE = 128          # lane width (last dim alignment)
_BF16_SUBLANE = 16   # bf16 sublane packing (second-to-last dim alignment)


def _round_up(x, m):
    return (x + m - 1) // m * m


def _largest_divisor_tile(total, upper):
    """Largest multiple of 128 that divides `total` (a multiple of 128) and is <= upper."""
    t = max(_LANE, (upper // _LANE) * _LANE)
    while total % t:
        t -= _LANE
    return t


def _vmem_limit_bytes():
    """Generation-aware VMEM limit: ~3/4 of physical capacity, conservative fallback."""
    try:
        cap = int(pltpu.get_tpu_info().vmem_capacity_bytes)
    except Exception:
        cap = 64 * 1024 * 1024          # worst case (v7x per-TC VMEM)
    return max(32 * 1024 * 1024, min(cap - cap // 4, 100 * 1024 * 1024))


def _mlp_kernel(x_ref, w_ref, b_ref, o_ref, acc_ref):
    # x_ref: (tm, tk), w_ref: (tk, tn), b_ref: (1, tn) f32,
    # o_ref: (tm, tn), acc_ref: (tm, tn) f32 scratch (persists across K steps).
    k = pl.program_id(2)

    @pl.when(k == 0)
    def _():
        # Fold the bias into the accumulator init: saves a tm*tn add + extra
        # accumulator read pass in the epilogue.
        acc_ref[...] = jnp.broadcast_to(b_ref[...], acc_ref.shape)

    acc_ref[...] += jnp.dot(x_ref[...], w_ref[...],
                            preferred_element_type=jnp.float32)

    @pl.when(k == pl.num_programs(2) - 1)
    def _():
        # Epilogue: ReLU in f32, single store per output tile.
        o_ref[...] = jnp.maximum(acc_ref[...], 0.0).astype(o_ref.dtype)


def prepare_mlp_params(weight, bias, *, compute_dtype=jnp.bfloat16):
    """One-time weight prep (transpose + lane-pad + cast). Cache and reuse across calls.

    weight: [Out, In] (PyTorch nn.Linear layout), bias: [Out].
    """
    Out, In = weight.shape
    Kp = _round_up(In, _LANE)
    Np = _round_up(Out, _LANE)
    w = weight.T.astype(compute_dtype)                     # [In, Out]
    if (Kp, Np) != (In, Out):
        w = jnp.zeros((Kp, Np), compute_dtype).at[:In, :Out].set(w)
    b = bias.astype(jnp.float32).reshape(1, Out)
    if Np != Out:
        b = jnp.zeros((1, Np), jnp.float32).at[:, :Out].set(b)
    return {"w": w, "b": b, "in_features": In, "out_features": Out,
            "compute_dtype": compute_dtype}


def mlp_forward_prepared(x, params, *, tm=512, tn=2048, tk=1024,
                         out_dtype=None, prefer_resident=True):
    """relu(x @ W.T + b) using pre-padded/cast weights from prepare_mlp_params."""
    w_p, b_p = params["w"], params["b"]
    In, Out = params["in_features"], params["out_features"]
    compute_dtype = params["compute_dtype"]
    Kp, Np = w_p.shape
    out_dtype = x.dtype if out_dtype is None else out_dtype

    lead = x.shape[:-1]
    assert x.shape[-1] == In
    x2 = x.reshape(-1, In).astype(compute_dtype)
    M = x2.shape[0]

    # ---------------- tile selection (VMEM-budget aware) ----------------
    cd = jnp.dtype(compute_dtype).itemsize
    od = jnp.dtype(out_dtype).itemsize
    vmem_limit = _vmem_limit_bytes()
    budget = vmem_limit - 8 * 1024 * 1024        # headroom for compiler scratch

    tm = min(tm, _round_up(M, _BF16_SUBLANE))
    tn = _largest_divisor_tile(Np, min(tn, Np))
    tk = _largest_divisor_tile(Kp, min(tk, Kp))

    def footprint(tm_, tn_, tk_):
        return (2 * tm_ * tk_ * cd        # x tiles (double-buffered)
                + 2 * tk_ * tn_ * cd      # w tiles (double-buffered)
                + 2 * tm_ * tn_ * od      # out tiles (double-buffered)
                + tm_ * tn_ * 4           # f32 accumulator scratch
                + 2 * tn_ * 4)            # bias

    # Fully-resident weight: one (Kp, Np) block whose index map is constant
    # over the whole grid -> the weight is DMA'd from HBM exactly once.
    if prefer_resident and footprint(tm, Np, Kp) <= budget:
        tn, tk = Np, Kp

    # Defensive shrink if the requested tiles overflow the VMEM budget.
    while footprint(tm, tn, tk) > budget and tn > _LANE:
        tn = _largest_divisor_tile(Np, tn - _LANE)
    while footprint(tm, tn, tk) > budget and tk > _LANE:
        tk = _largest_divisor_tile(Kp, tk - _LANE)
    while footprint(tm, tn, tk) > budget and tm > _BF16_SUBLANE:
        tm = max(_BF16_SUBLANE, tm // 2)

    Mp = _round_up(M, tm)

    # Give both v7x TensorCores work: split N when the parallel grid would be 1x1.
    if Mp // tm == 1 and Np // tn == 1 and Np % (2 * _LANE) == 0:
        tn = Np // 2

    # ---------------- pad activations only when needed ------------------
    if (Mp, Kp) != (M, In):
        x_p = jnp.zeros((Mp, Kp), compute_dtype).at[:M, :In].set(x2)
    else:
        x_p = x2

    grid = (Mp // tm, Np // tn, Kp // tk)        # reduction axis (K) innermost

    cost = pl.CostEstimate(
        flops=2 * M * In * Out,
        transcendentals=0,
        bytes_accessed=(M * In + In * Out) * cd + M * Out * od,
    )

    out_p = pl.pallas_call(
        _mlp_kernel,
        out_shape=jax.ShapeDtypeStruct((Mp, Np), out_dtype),
        grid=grid,
        in_specs=[
            pl.BlockSpec((tm, tk), lambda i, j, k: (i, k)),
            pl.BlockSpec((tk, tn), lambda i, j, k: (k, j)),
            pl.BlockSpec((1, tn), lambda i, j, k: (0, j)),
        ],
        out_specs=pl.BlockSpec((tm, tn), lambda i, j, k: (i, j)),
        scratch_shapes=[pltpu.VMEM((tm, tn), jnp.float32)],
        compiler_params=pltpu.CompilerParams(
            dimension_semantics=("parallel", "parallel", "arbitrary"),
            vmem_limit_bytes=vmem_limit,
        ),
        cost_estimate=cost,
    )(x_p, w_p, b_p)

    return out_p[:M, :Out].reshape(*lead, Out)


def mlp_forward(x, weight, bias, *, compute_dtype=jnp.bfloat16, **kwargs):
    """Convenience wrapper: prepares (transposes/pads/casts) weights per call.
    For repeated calls with fixed weights, prepare once with prepare_mlp_params()."""
    params = prepare_mlp_params(weight, bias, compute_dtype=compute_dtype)
    return mlp_forward_prepared(x, params, **kwargs)


def mlp_reference(x, weight, bias, compute_dtype=jnp.bfloat16):
    """XLA reference with matching bf16-input / f32-accumulate numerics."""
    y = jnp.dot(x.astype(compute_dtype), weight.T.astype(compute_dtype),
                preferred_element_type=jnp.float32)
    y = y + bias[None, :].astype(jnp.float32)
    return jnp.maximum(y, 0.0).astype(x.dtype)


if __name__ == "__main__":
    key = jax.random.PRNGKey(0)

    # --- Test 1: nominal small shapes, 3-D input, prepared-params path -----
    k_x, k_w, k_b = jax.random.split(key, 3)
    b0, b1, input_size, output_size = 2, 4, 32, 64
    x = jax.random.normal(k_x, (b0, b1, input_size), dtype=jnp.float32)
    weight = jax.random.normal(k_w, (output_size, input_size),
                               dtype=jnp.float32) * 0.1     # PyTorch [Out, In]
    bias = jax.random.normal(k_b, (output_size,), dtype=jnp.float32) * 0.1

    params = prepare_mlp_params(weight, bias)                # hoisted weight prep
    out = jax.block_until_ready(mlp_forward_prepared(x, params))
    _ = jax.block_until_ready(mlp_forward_prepared(x, params))  # reuse, no re-prep
    ref = mlp_reference(x, weight, bias)
    assert out.shape == (b0, b1, output_size)
    assert jnp.allclose(out, ref, atol=1e-3, rtol=1e-3)

    # --- Test 2: non-aligned shapes, resident-weight path + N split --------
    k_x2, k_w2, k_b2 = jax.random.split(jax.random.PRNGKey(1), 3)
    M2, In2, Out2 = 40, 300, 200
    x2 = jax.random.normal(k_x2, (M2, In2), dtype=jnp.float32)
    w2 = jax.random.normal(k_w2, (Out2, In2), dtype=jnp.float32) * 0.05
    b2 = jax.random.normal(k_b2, (Out2,), dtype=jnp.float32) * 0.1

    out2 = jax.block_until_ready(mlp_forward(x2, w2, b2))
    ref2 = mlp_reference(x2, w2, b2)
    assert out2.shape == (M2, Out2)
    assert jnp.allclose(out2, ref2, atol=1e-3, rtol=1e-3)

    # --- Test 3: force full M/N/K tiling (multi-step K accumulation path) --
    out3 = jax.block_until_ready(
        mlp_forward(x2, w2, b2, tm=16, tn=128, tk=128, prefer_resident=False))
    assert out3.shape == (M2, Out2)
    assert jnp.allclose(out3, ref2, atol=1e-3, rtol=1e-3)

    print("KERNEL_OK")
</pallas_src>

<mosaic_0001>
module attributes {stable_mosaic.version = 11 : i64} {
  func.func @_mlp_kernel(%arg0: i32, %arg1: i32, %arg2: i32, %arg3: memref<16x128xbf16, #tpu.memory_space<vmem>>, %arg4: memref<128x128xbf16, #tpu.memory_space<vmem>>, %arg5: memref<1x128xf32, #tpu.memory_space<vmem>>, %arg6: memref<16x128xf32, #tpu.memory_space<vmem>>, %arg7: memref<16x128xf32, #tpu.memory_space<vmem>>) attributes {dimension_semantics = [#tpu.dimension_semantics<parallel>, #tpu.dimension_semantics<parallel>, #tpu.dimension_semantics<arbitrary>], iteration_bounds = array<i64: 1, 1, 1>, scalar_prefetch = 0 : i64, scratch_operands = 1 : i64, tpu.core_type = #tpu.core_type<tc>, window_params = [{transform_indices = @transform_0, window_bounds = array<i64: 16, 128>}, {transform_indices = @transform_1, window_bounds = array<i64: 128, 128>}, {transform_indices = @transform_2, window_bounds = array<i64: 1, 128>}, {transform_indices = @transform_3, window_bounds = array<i64: 16, 128>}]} {
    %c0_i32 = arith.constant 0 : i32
    %0 = arith.cmpi eq, %arg2, %c0_i32 : i32
    %1 = arith.extui %0 : i1 to i32
    %c0_i32_0 = arith.constant 0 : i32
    %2 = arith.cmpi ne, %1, %c0_i32_0 : i32
    scf.if %2 {
      %c0_10 = arith.constant 0 : index
      %c0_11 = arith.constant 0 : index
      %12 = vector.load %arg5[%c0_10, %c0_11] : memref<1x128xf32, #tpu.memory_space<vmem>>, vector<1x128xf32>
      %13 = vector.shape_cast %12 : vector<1x128xf32> to vector<1x128xf32>
      %14 = vector.broadcast %13 : vector<1x128xf32> to vector<16x128xf32>
      %c0_12 = arith.constant 0 : index
      %c0_13 = arith.constant 0 : index
      %15 = vector.load %arg7[%c0_12, %c0_13] : memref<16x128xf32, #tpu.memory_space<vmem>>, vector<16x128xf32>
      tpu.vector_store %arg7[%c0_12, %c0_13], %14 {strides = array<i32>} : memref<16x128xf32, #tpu.memory_space<vmem>>, vector<16x128xf32>,
    } else {
    }
    %c0 = arith.constant 0 : index
    %c0_1 = arith.constant 0 : index
    %3 = vector.load %arg7[%c0, %c0_1] : memref<16x128xf32, #tpu.memory_space<vmem>>, vector<16x128xf32>
    %c0_2 = arith.constant 0 : index
    %c0_3 = arith.constant 0 : index
    %4 = vector.load %arg3[%c0_2, %c0_3] : memref<16x128xbf16, #tpu.memory_space<vmem>>, vector<16x128xbf16>
    %c0_4 = arith.constant 0 : index
    %c0_5 = arith.constant 0 : index
    %5 = vector.load %arg4[%c0_4, %c0_5] : memref<128x128xbf16, #tpu.memory_space<vmem>>, vector<128x128xbf16>
    %cst = arith.constant dense<0.000000e+00> : vector<16x128xf32>
    %6 = tpu.matmul %4, %5, %cst {dimension_numbers = #tpu.dot_dimension_numbers<[1], [0], [0], [1], [0, 0, 1, 1], [], []>} : vector<16x128xbf16>, vector<128x128xbf16>, vector<16x128xf32> -> vector<16x128xf32>
    %7 = arith.addf %3, %6 : vector<16x128xf32>
    %c0_6 = arith.constant 0 : index
    %c0_7 = arith.constant 0 : index
    %8 = vector.load %arg7[%c0_6, %c0_7] : memref<16x128xf32, #tpu.memory_space<vmem>>, vector<16x128xf32>
    tpu.vector_store %arg7[%c0_6, %c0_7], %7 {strides = array<i32>} : memref<16x128xf32, #tpu.memory_space<vmem>>, vector<16x128xf32>,
    %c0_i32_8 = arith.constant 0 : i32
    %9 = arith.cmpi eq, %arg2, %c0_i32_8 : i32
    %10 = arith.extui %9 : i1 to i32
    %c0_i32_9 = arith.constant 0 : i32
    %11 = arith.cmpi ne, %10, %c0_i32_9 : i32
    scf.if %11 {
      %c0_10 = arith.constant 0 : index
      %c0_11 = arith.constant 0 : index
      %12 = vector.load %arg7[%c0_10, %c0_11] : memref<16x128xf32, #tpu.memory_space<vmem>>, vector<16x128xf32>
      %cst_12 = arith.constant 0.000000e+00 : f32
      %13 = vector.broadcast %cst_12 : f32 to vector<16x128xf32>
      %14 = arith.maximumf %12, %13 : vector<16x128xf32>
      %c0_13 = arith.constant 0 : index
      %c0_14 = arith.constant 0 : index
      %15 = vector.load %arg6[%c0_13, %c0_14] : memref<16x128xf32, #tpu.memory_space<vmem>>, vector<16x128xf32>
      tpu.vector_store %arg6[%c0_13, %c0_14], %14 {strides = array<i32>} : memref<16x128xf32, #tpu.memory_space<vmem>>, vector<16x128xf32>,
    } else {
    }
    return
  }
  func.func @transform_0(%arg0: i32, %arg1: i32, %arg2: i32) -> (i32, i32) {
    %c0_i32 = arith.constant 0 : i32
    return %arg0, %arg2 : i32, i32
  }
  func.func @transform_1(%arg0: i32, %arg1: i32, %arg2: i32) -> (i32, i32) {
    %c0_i32 = arith.constant 0 : i32
    return %arg2, %arg1 : i32, i32
  }
  func.func @transform_2(%arg0: i32, %arg1: i32, %arg2: i32) -> (i32, i32) {
    %c0_i32 = arith.constant 0 : i32
    %c0_i32_0 = arith.constant 0 : i32
    return %c0_i32, %arg1 : i32, i32
  }
  func.func @transform_3(%arg0: i32, %arg1: i32, %arg2: i32) -> (i32, i32) {
    %c0_i32 = arith.constant 0 : i32
    return %arg0, %arg1 : i32, i32
  }
}

</mosaic_0001>

<llo_original>
// kernel: tpu_custom_call.1
$region0: #{tpu_custom_call.1}
  #allocation0 [shape = 'u32[]', space=smem, size = 0x4, offset = 0x4, fixed_abs, tag = 'smem constant byte address 0x4 - core index']
  #allocation1 [shape = 'u32[144,128]{1,0:T(1,128)}', space=vmem, size = 0x12000, scoped, tag = 'internal scratch']
  #allocation2 [shape = 'f32[16,128]{1,0:T(8,128)}', space=vmem, size = 0x2000, scoped, tag = 'scratch operand']
  %s0 = inlined_call_operand.hbm [shape: bf16[16,128], index: 0, kind: input, shape index: {}]
  %s1 = inlined_call_operand.hbm [shape: bf16[128,128], index: 1, kind: input, shape index: {}]
  %s2 = inlined_call_operand.vmem [shape: f32[1,128], index: 2, kind: input, shape index: {}]
  %s3 = inlined_call_operand.hbm [shape: f32[16,128], index: 3, kind: output, shape index: {}]
  %s4 = sld [smem:[#allocation0]]
  $region38: #{tpu_custom_call.1} parent=0
    _
  %s6 = ssub.s32 1, %s4
  %s7 = scalar_select 0, %s6, %s4
  $region1: #{tpu_custom_call.1} parent=0
    #allocation3 [shape = 'u8[4096]{0}', space=vmem, size = 0x1000, scoped, tag = 'input window, operand 0, single buffered']
    #allocation4 [shape = 's32[1]{0}', space=sflag, size = 0x4, scoped, tag = 'scoped memory for tpu_custom_call.1']
    #allocation5 [shape = 's32[1]{0}', space=sflag, size = 0x4, scoped, tag = 'scoped memory for tpu_custom_call.1']
    #allocation6 [shape = 'u8[32768]{0}', space=vmem, size = 0x8000, scoped, tag = 'input window, operand 1, single buffered']
    #allocation7 [shape = 's32[1]{0}', space=sflag, size = 0x4, scoped, tag = 'scoped memory for tpu_custom_call.1']
    #allocation8 [shape = 'u8[8192]{0}', space=vmem, size = 0x2000, scoped, tag = 'output window, operand 0, single buffered']
    %8 = vsyncpa [#allocation4], 0
    %9 = vsyncpa [#allocation7], 0
    %10 = vsyncpa [#allocation5], 0
    // Predicated region
    $region2: #{tpu_custom_call.1} parent=1 // pred_check
      _
    $region3: #{tpu_custom_call.1} parent=1 // pred_check_branch
      %12 = sbr.rel (0) target = $region5
    $region4: #{tpu_custom_call.1} parent=1 // pred_region
      %s14 = ssub.s32 128, 128
      %15 = vsyncadd [#allocation4], %s14
      %s16 = sshll.u32 [#allocation3], 4
      %s17 = int_to_ptr.vmem [resolvable:$true] %s16
      %22 = dma.hbm_to_vmem [thread:$0]  %s0, 128, %s17, [#allocation4], 64, 64, 4
    $region5: #{tpu_custom_call.1} parent=1 // pred_fallthru
      _
    // Predicated region
    $region6: #{tpu_custom_call.1} parent=1 // pred_check
      _
    $region7: #{tpu_custom_call.1} parent=1 // pred_check_branch
      %24 = sbr.rel (0) target = $region9
    $region8: #{tpu_custom_call.1} parent=1 // pred_region
      %s26 = ssub.s32 1024, 1024
      %27 = vsyncadd [#allocation7], %s26
      %s28 = sshll.u32 [#allocation6], 4
      %s29 = int_to_ptr.vmem [resolvable:$true] %s28
      %34 = dma.hbm_to_vmem [thread:$0]  %s1, 1024, %s29, [#allocation7], 64, 64, 4
    $region9: #{tpu_custom_call.1} parent=1 // pred_fallthru
      _
    // Predicated region
    $region10: #{tpu_custom_call.1} parent=1 // pred_check
      _
    $region11: #{tpu_custom_call.1} parent=1 // pred_check_branch
      %36 = sbr.rel (0) target = $region13
    $region12: #{tpu_custom_call.1} parent=1 // pred_region
      _
    $region13: #{tpu_custom_call.1} parent=1 // pred_fallthru
      _
    // Predicated region
    $region14: #{tpu_custom_call.1} parent=1 // pred_check
      _
    $region15: #{tpu_custom_call.1} parent=1 // pred_check_branch
      %38 = sbr.rel (0) target = $region17
    $region16: #{tpu_custom_call.1} parent=1 // pred_region
      %39 = dma.done [#allocation4], 128
    $region17: #{tpu_custom_call.1} parent=1 // pred_fallthru
      _
    // Predicated region
    $region18: #{tpu_custom_call.1} parent=1 // pred_check
      _
    $region19: #{tpu_custom_call.1} parent=1 // pred_check_branch
      %41 = sbr.rel (0) target = $region21
    $region20: #{tpu_custom_call.1} parent=1 // pred_region
      %42 = dma.done [#allocation7], 1024
    $region21: #{tpu_custom_call.1} parent=1 // pred_fallthru
      _
    %p44 = scmp.eq.s32.totalorder 0, 0
    // Predicated region
    $region22: #{tpu_custom_call.1} parent=1 // pred_check
      %p45 = pneg %p44
    $region23: #{tpu_custom_call.1} parent=1 // pred_check_branch
      %47 = sbr.rel (%p45) target = $region25
    $region24: #{tpu_custom_call.1} parent=1 // pred_region
      %v48 = vld [vmem:[%s2] sm:$0x1]
      %v50 = vlaneseq
      %v51 = vshrl.u32 %v50, 7
      %v52 = vsub.s32 0, %v51
      %v53 = vrot.slane %v48, %v52
      %55 = vst [vmem:[#allocation2] sm:$0xff] %v53
      %56 = vst [vmem:[#allocation2 + $0x8] sm:$0xff] %v53
    $region25: #{tpu_custom_call.1} parent=1 // pred_fallthru
      _
    %v57 = vld [vmem:[#allocation2] sm:$0xff]
    %v58 = vld [vmem:[#allocation2 + $0x8] sm:$0xff]
    %v59 = vld [vmem:[#allocation3] sm:$0xf]
    %v60 = vld [vmem:[#allocation3 + $0x4] sm:$0xf]
    %v61 = vld [vmem:[#allocation6] sm:$0xf]
    %v62 = vld [vmem:[#allocation6 + $0x4] sm:$0xf]
    %v63 = vld [vmem:[#allocation6 + $0x8] sm:$0xf]
    %v64 = vld [vmem:[#allocation6 + $0xc] sm:$0xf]
    %v65 = vld [vmem:[#allocation6 + $0x10] sm:$0xf]
    %v66 = vld [vmem:[#allocation6 + $0x14] sm:$0xf]
    %v67 = vld [vmem:[#allocation6 + $0x18] sm:$0xf]
    %v68 = vld [vmem:[#allocation6 + $0x1c] sm:$0xf]
    %v69 = vld [vmem:[#allocation6 + $0x20] sm:$0xf]
    %v70 = vld [vmem:[#allocation6 + $0x24] sm:$0xf]
    %v71 = vld [vmem:[#allocation6 + $0x28] sm:$0xf]
    %v72 = vld [vmem:[#allocation6 + $0x2c] sm:$0xf]
    %v73 = vld [vmem:[#allocation6 + $0x30] sm:$0xf]
    %v74 = vld [vmem:[#allocation6 + $0x34] sm:$0xf]
    %v75 = vld [vmem:[#allocation6 + $0x38] sm:$0xf]
    %v76 = vld [vmem:[#allocation6 + $0x3c] sm:$0xf]
    %v79 = vunpack.c.l.b16 %v59
    %v80 = vunpack.c.l.b16 %v60
    %v81 = vpack.c.b16 %v80, %v79
    %v99 = vunpack.c.l.b16 %v61
    %v100 = vunpack.c.l.b16 %v62
    %v101 = vunpack.c.l.b16 %v63
    %v102 = vunpack.c.l.b16 %v64
    %v103 = vunpack.c.l.b16 %v65
    %v104 = vunpack.c.l.b16 %v66
    %v105 = vunpack.c.l.b16 %v67
    %v106 = vunpack.c.l.b16 %v68
    %v107 = vunpack.c.l.b16 %v69
    %v108 = vunpack.c.l.b16 %v70
    %v109 = vunpack.c.l.b16 %v71
    %v110 = vunpack.c.l.b16 %v72
    %v111 = vunpack.c.l.b16 %v73
    %v112 = vunpack.c.l.b16 %v74
    %v113 = vunpack.c.l.b16 %v75
    %v114 = vunpack.c.l.b16 %v76
    %v115 = vpack.c.b16 %v100, %v99
    %v116 = vpack.c.b16 %v102, %v101
    %v117 = vpack.c.b16 %v104, %v103
    %v118 = vpack.c.b16 %v106, %v105
    %v119 = vpack.c.b16 %v108, %v107
    %v120 = vpack.c.b16 %v110, %v109
    %v121 = vpack.c.b16 %v112, %v111
    %v122 = vpack.c.b16 %v114, %v113
    %131 = vmatprep.subr.bf16.mxu0 0
    %132 = vmatpush1.bf16.msra.mxu0 %v115
    %133 = vmatprep.subr.bf16.mxu0 0
    %134 = vmatpush1.bf16.msra.mxu0 %v116
    %135 = vmatprep.subr.bf16.mxu0 0
    %136 = vmatpush1.bf16.msra.mxu0 %v117
    %137 = vmatprep.subr.bf16.mxu0 0
    %138 = vmatpush1.bf16.msra.mxu0 %v118
    %139 = vmatprep.subr.bf16.mxu0 0
    %140 = vmatpush1.bf16.msra.mxu0 %v119
    %141 = vmatprep.subr.bf16.mxu0 0
    %142 = vmatpush1.bf16.msra.mxu0 %v120
    %143 = vmatprep.subr.bf16.mxu0 0
    %144 = vmatpush1.bf16.msra.mxu0 %v121
    %145 = vmatprep.subr.bf16.mxu0 0
    %146 = vmatpush1.bf16.msra.mxu0 %v122
    %147 = vmatprep.subr.bf16.mxu0 0
    %148 = vmatpush1.bf16.msra.mxu0 0
    %149 = vmatprep.subr.bf16.mxu0 0
    %150 = vmatpush1.bf16.msra.mxu0 0
    %151 = vmatprep.subr.bf16.mxu0 0
    %152 = vmatpush1.bf16.msra.mxu0 0
    %153 = vmatprep.subr.bf16.mxu0 0
    %154 = vmatpush1.bf16.msra.mxu0 0
    %155 = vmatprep.subr.bf16.mxu0 0
    %156 = vmatpush1.bf16.msra.mxu0 0
    %157 = vmatprep.subr.bf16.mxu0 0
    %158 = vmatpush1.bf16.msra.mxu0 0
    %159 = vmatprep.subr.bf16.mxu0 0
    %160 = vmatpush1.bf16.msra.mxu0 0
    %161 = vmatprep.subr.bf16.mxu0 0
    %162 = vmatpush1.bf16.msra.mxu0 0
    %163 = vmatprep.mubr.bf16.mxu0 0
    %164 = vmatmul.mubr.bf16.gmra.mrb[0].mxu0 %v81
    %v165 = vpop.f32.mrb[0].mxu0
    %v166 = vadd.f32 0.0, %v165
    %v167 = vpop.f32.mrb[0].mxu0
    %v168 = vpop.f32.mrb[0].mxu0
    %v169 = vadd.f32 0.0, %v168
    %v170 = vpop.f32.mrb[0].mxu0
    %171 = vdwg.mxu0
    %v172 = vadd.f32 %v57, %v166
    %v173 = vadd.f32 %v58, %v169
    %174 = vst [vmem:[#allocation2] sm:$0xff] %v172
    %175 = vst [vmem:[#allocation2 + $0x8] sm:$0xff] %v173
    // Predicated region
    $region26: #{tpu_custom_call.1} parent=1 // pred_check
      %p176 = pneg %p44
    $region27: #{tpu_custom_call.1} parent=1 // pred_check_branch
      %178 = sbr.rel (%p176) target = $region29
    $region28: #{tpu_custom_call.1} parent=1 // pred_region
      %v179 = vld [vmem:[#allocation2] sm:$0xff]
      %v180 = vld [vmem:[#allocation2 + $0x8] sm:$0xff]
      %v181 = vmax.f32 %v179, 0.0
      %v182 = vmax.f32 %v180, 0.0
      %183 = vst [vmem:[#allocation8] sm:$0xff] %v181
      %184 = vst [vmem:[#allocation8 + $0x8] sm:$0xff] %v182
    $region29: #{tpu_custom_call.1} parent=1 // pred_fallthru
      _
    // Predicated region
    $region30: #{tpu_custom_call.1} parent=1 // pred_check
      _
    $region31: #{tpu_custom_call.1} parent=1 // pred_check_branch
      %186 = sbr.rel (0) target = $region33
    $region32: #{tpu_custom_call.1} parent=1 // pred_region
      %s188 = ssub.s32 256, 256
      %189 = vsyncadd [#allocation5], %s188
      %s190 = sshll.u32 [#allocation8], 4
      %s191 = int_to_ptr.vmem [resolvable:$true] %s190
      %196 = dma.vmem_to_hbm [thread:$0]  %s191, 256, %s3, [#allocation5], 128, 128, 8
    $region33: #{tpu_custom_call.1} parent=1 // pred_fallthru
      _
    // Predicated region
    $region34: #{tpu_custom_call.1} parent=1 // pred_check
      _
    $region35: #{tpu_custom_call.1} parent=1 // pred_check_branch
      %198 = sbr.rel (0) target = $region37
    $region36: #{tpu_custom_call.1} parent=1 // pred_region
      %199 = dma.done [#allocation5], 256
    $region37: #{tpu_custom_call.1} parent=1 // pred_fallthru
      _
    %200 = vsyncpa [#allocation4], 1
    %201 = vsyncpa [#allocation7], 1
    %202 = vsyncpa [#allocation5], 1

</llo_original>
